<compile_context>
chip_gen: v7x
topology: tpu7x:2x2x1
jax: 0.10.0
libtpu: 0.0.40
codegen_flags: <defaults>
</compile_context>

<pallas_src>
import jax
import jax.numpy as jnp
from jax.experimental import pallas as pl
from jax.experimental.pallas import tpu as pltpu


def _autoencoder_kernel(x_ref, m_ref,
                        w1_ref, b1_ref, w2_ref, b2_ref, w3_ref, b3_ref,
                        w4_ref, b4_ref, w5_ref, b5_ref, w6_ref, b6_ref,
                        out_ref):
    """One batch tile. Activations are (features, TM): batch on the lane axis."""
    # Inverted dropout: mask is {0, 1/(1-p)} elementwise, precomputed host-side.
    x_missed = x_ref[...] * m_ref[...]

    def linear(w_ref, b_ref, h):
        # W is (out, in), h is (in, TM), b is (out, 1) -> broadcast over lanes.
        return jnp.dot(w_ref[...], h, preferred_element_type=jnp.float32) + b_ref[...]

    # encoder
    h = jnp.tanh(linear(w1_ref, b1_ref, x_missed))
    h = jnp.tanh(linear(w2_ref, b2_ref, h))
    z = linear(w3_ref, b3_ref, h)
    # decoder
    h = jnp.tanh(linear(w4_ref, b4_ref, z))
    h = jnp.tanh(linear(w5_ref, b5_ref, h))
    out = linear(w6_ref, b6_ref, h)

    out_ref[...] = out.astype(out_ref.dtype)


def init_autoencoder_params(key, dim, theta):
    """nn.Linear-style U(-1/sqrt(fan_in), 1/sqrt(fan_in)); W stored (out, in), b (out, 1)."""
    sizes = [dim + theta * k for k in (0, 1, 2, 3, 2, 1, 0)]
    params = []
    for i in range(6):
        fan_in, fan_out = sizes[i], sizes[i + 1]
        key, kw, kb = jax.random.split(key, 3)
        bound = 1.0 / (fan_in ** 0.5)
        w = jax.random.uniform(kw, (fan_out, fan_in), jnp.float32, -bound, bound)
        b = jax.random.uniform(kb, (fan_out, 1), jnp.float32, -bound, bound)
        params.append((w, b))
    return params


def autoencoder_forward(x, params, dim, dropout_p, *, key=None, training=True):
    """x: any shape with total size a multiple of `dim`; returns (-1, dim)."""
    x2d = x.reshape(-1, dim).astype(jnp.float32)
    batch = x2d.shape[0]

    # Batch tile: multiple of 128 lanes, capped so VMEM stays tiny even on v7x (64 MiB).
    TM = min(1024, pl.cdiv(batch, 128) * 128)
    padded = pl.cdiv(batch, TM) * TM
    n_tiles = padded // TM

    # Transpose to lane-dense layout (features, batch) and zero-pad the batch axis.
    xt = jnp.pad(x2d.T, ((0, 0), (0, padded - batch)))

    # Dropout keep-mask (training-mode inverted dropout), pre-scaled by 1/(1-p).
    if training and dropout_p > 0.0:
        if key is None:
            key = jax.random.PRNGKey(0)
        keep = jax.random.bernoulli(key, 1.0 - dropout_p, (dim, padded))
        mask = keep.astype(jnp.float32) / jnp.float32(1.0 - dropout_p)
    else:
        mask = jnp.ones((dim, padded), jnp.float32)

    flat_params = []
    param_specs = []
    for w, b in params:
        flat_params += [w, b]
        # Constant index map -> parameters fetched once, VMEM-resident across the grid.
        param_specs.append(pl.BlockSpec(w.shape, lambda i: (0, 0)))
        param_specs.append(pl.BlockSpec(b.shape, lambda i: (0, 0)))

    act_spec = pl.BlockSpec((dim, TM), lambda i: (0, i))

    # Advisory cost estimate for XLA scheduling.
    flops = 2 * padded * sum(w.shape[0] * w.shape[1] for w, _ in params)
    transcendentals = padded * sum(params[k][0].shape[0] for k in (0, 1, 3, 4))
    bytes_accessed = 4 * (3 * dim * padded
                          + sum(w.size + b.size for w, b in params))

    out_t = pl.pallas_call(
        _autoencoder_kernel,
        out_shape=jax.ShapeDtypeStruct((dim, padded), jnp.float32),
        grid=(n_tiles,),
        in_specs=[act_spec, act_spec] + param_specs,
        out_specs=act_spec,
        compiler_params=pltpu.CompilerParams(
            dimension_semantics=("parallel",)),
        cost_estimate=pl.CostEstimate(
            flops=flops,
            transcendentals=transcendentals,
            bytes_accessed=bytes_accessed),
    )(xt, mask, *flat_params)

    # Back to (batch, dim) row-major, dropping batch padding.
    return out_t[:, :batch].T


if __name__ == "__main__":
    dim, theta, dropout_p = 32, 8, 0.2

    key = jax.random.PRNGKey(0)
    key, kx, kp, kd = jax.random.split(key, 4)

    # (2, 4, 32) -> view(-1, 32) -> batch of 8 rows, exercising the reshape path.
    x = jax.random.normal(kx, (2, 4, dim), dtype=jnp.float32)
    params = init_autoencoder_params(kp, dim, theta)

    out = autoencoder_forward(x, params, dim, dropout_p, key=kd, training=True)
    out = jax.block_until_ready(out)

    assert out.shape == (8, dim), out.shape
    assert bool(jnp.all(jnp.isfinite(out)))
    print("KERNEL_OK")
</pallas_src>

<mosaic_0001>
module attributes {stable_mosaic.version = 11 : i64} {
  func.func @_autoencoder_kernel(%arg0: i32, %arg1: memref<32x128xf32, #tpu.memory_space<vmem>>, %arg2: memref<32x128xf32, #tpu.memory_space<vmem>>, %arg3: memref<40x32xf32, #tpu.memory_space<vmem>>, %arg4: memref<40x1xf32, #tpu.memory_space<vmem>>, %arg5: memref<48x40xf32, #tpu.memory_space<vmem>>, %arg6: memref<48x1xf32, #tpu.memory_space<vmem>>, %arg7: memref<56x48xf32, #tpu.memory_space<vmem>>, %arg8: memref<56x1xf32, #tpu.memory_space<vmem>>, %arg9: memref<48x56xf32, #tpu.memory_space<vmem>>, %arg10: memref<48x1xf32, #tpu.memory_space<vmem>>, %arg11: memref<40x48xf32, #tpu.memory_space<vmem>>, %arg12: memref<40x1xf32, #tpu.memory_space<vmem>>, %arg13: memref<32x40xf32, #tpu.memory_space<vmem>>, %arg14: memref<32x1xf32, #tpu.memory_space<vmem>>, %arg15: memref<32x128xf32, #tpu.memory_space<vmem>>) attributes {dimension_semantics = [#tpu.dimension_semantics<parallel>], iteration_bounds = array<i64: 1>, scalar_prefetch = 0 : i64, scratch_operands = 0 : i64, tpu.core_type = #tpu.core_type<tc>, window_params = [{transform_indices = @transform_0, window_bounds = array<i64: 32, 128>}, {transform_indices = @transform_1, window_bounds = array<i64: 32, 128>}, {pipeline_mode = #tpu.pipeline_mode<synchronous>, transform_indices = @transform_2, window_bounds = array<i64: 40, 32>}, {pipeline_mode = #tpu.pipeline_mode<synchronous>, transform_indices = @transform_3, window_bounds = array<i64: 40, 1>}, {pipeline_mode = #tpu.pipeline_mode<synchronous>, transform_indices = @transform_4, window_bounds = array<i64: 48, 40>}, {pipeline_mode = #tpu.pipeline_mode<synchronous>, transform_indices = @transform_5, window_bounds = array<i64: 48, 1>}, {pipeline_mode = #tpu.pipeline_mode<synchronous>, transform_indices = @transform_6, window_bounds = array<i64: 56, 48>}, {pipeline_mode = #tpu.pipeline_mode<synchronous>, transform_indices = @transform_7, window_bounds = array<i64: 56, 1>}, {pipeline_mode = #tpu.pipeline_mode<synchronous>, transform_indices = @transform_8, window_bounds = array<i64: 48, 56>}, {pipeline_mode = #tpu.pipeline_mode<synchronous>, transform_indices = @transform_9, window_bounds = array<i64: 48, 1>}, {pipeline_mode = #tpu.pipeline_mode<synchronous>, transform_indices = @transform_10, window_bounds = array<i64: 40, 48>}, {pipeline_mode = #tpu.pipeline_mode<synchronous>, transform_indices = @transform_11, window_bounds = array<i64: 40, 1>}, {pipeline_mode = #tpu.pipeline_mode<synchronous>, transform_indices = @transform_12, window_bounds = array<i64: 32, 40>}, {pipeline_mode = #tpu.pipeline_mode<synchronous>, transform_indices = @transform_13, window_bounds = array<i64: 32, 1>}, {transform_indices = @transform_14, window_bounds = array<i64: 32, 128>}]} {
    %c0 = arith.constant 0 : index
    %c0_0 = arith.constant 0 : index
    %0 = vector.load %arg1[%c0, %c0_0] : memref<32x128xf32, #tpu.memory_space<vmem>>, vector<32x128xf32>
    %c0_1 = arith.constant 0 : index
    %c0_2 = arith.constant 0 : index
    %1 = vector.load %arg2[%c0_1, %c0_2] : memref<32x128xf32, #tpu.memory_space<vmem>>, vector<32x128xf32>
    %2 = arith.mulf %0, %1 : vector<32x128xf32>
    %c0_3 = arith.constant 0 : index
    %c0_4 = arith.constant 0 : index
    %3 = vector.load %arg3[%c0_3, %c0_4] : memref<40x32xf32, #tpu.memory_space<vmem>>, vector<40x32xf32>
    %cst = arith.constant dense<0.000000e+00> : vector<40x128xf32>
    %4 = tpu.matmul %3, %2, %cst {dimension_numbers = #tpu.dot_dimension_numbers<[1], [0], [0], [1], [0, 0, 1, 1], [], []>} : vector<40x32xf32>, vector<32x128xf32>, vector<40x128xf32> -> vector<40x128xf32>
    %c0_5 = arith.constant 0 : index
    %c0_6 = arith.constant 0 : index
    %5 = vector.load %arg4[%c0_5, %c0_6] : memref<40x1xf32, #tpu.memory_space<vmem>>, vector<40x1xf32>
    %6 = vector.broadcast %5 : vector<40x1xf32> to vector<40x128xf32>
    %7 = arith.addf %4, %6 : vector<40x128xf32>
    %8 = math.tanh %7 : vector<40x128xf32>
    %c0_7 = arith.constant 0 : index
    %c0_8 = arith.constant 0 : index
    %9 = vector.load %arg5[%c0_7, %c0_8] : memref<48x40xf32, #tpu.memory_space<vmem>>, vector<48x40xf32>
    %cst_9 = arith.constant dense<0.000000e+00> : vector<48x128xf32>
    %10 = tpu.matmul %9, %8, %cst_9 {dimension_numbers = #tpu.dot_dimension_numbers<[1], [0], [0], [1], [0, 0, 1, 1], [], []>} : vector<48x40xf32>, vector<40x128xf32>, vector<48x128xf32> -> vector<48x128xf32>
    %c0_10 = arith.constant 0 : index
    %c0_11 = arith.constant 0 : index
    %11 = vector.load %arg6[%c0_10, %c0_11] : memref<48x1xf32, #tpu.memory_space<vmem>>, vector<48x1xf32>
    %12 = vector.broadcast %11 : vector<48x1xf32> to vector<48x128xf32>
    %13 = arith.addf %10, %12 : vector<48x128xf32>
    %14 = math.tanh %13 : vector<48x128xf32>
    %c0_12 = arith.constant 0 : index
    %c0_13 = arith.constant 0 : index
    %15 = vector.load %arg7[%c0_12, %c0_13] : memref<56x48xf32, #tpu.memory_space<vmem>>, vector<56x48xf32>
    %cst_14 = arith.constant dense<0.000000e+00> : vector<56x128xf32>
    %16 = tpu.matmul %15, %14, %cst_14 {dimension_numbers = #tpu.dot_dimension_numbers<[1], [0], [0], [1], [0, 0, 1, 1], [], []>} : vector<56x48xf32>, vector<48x128xf32>, vector<56x128xf32> -> vector<56x128xf32>
    %c0_15 = arith.constant 0 : index
    %c0_16 = arith.constant 0 : index
    %17 = vector.load %arg8[%c0_15, %c0_16] : memref<56x1xf32, #tpu.memory_space<vmem>>, vector<56x1xf32>
    %18 = vector.broadcast %17 : vector<56x1xf32> to vector<56x128xf32>
    %19 = arith.addf %16, %18 : vector<56x128xf32>
    %c0_17 = arith.constant 0 : index
    %c0_18 = arith.constant 0 : index
    %20 = vector.load %arg9[%c0_17, %c0_18] : memref<48x56xf32, #tpu.memory_space<vmem>>, vector<48x56xf32>
    %cst_19 = arith.constant dense<0.000000e+00> : vector<48x128xf32>
    %21 = tpu.matmul %20, %19, %cst_19 {dimension_numbers = #tpu.dot_dimension_numbers<[1], [0], [0], [1], [0, 0, 1, 1], [], []>} : vector<48x56xf32>, vector<56x128xf32>, vector<48x128xf32> -> vector<48x128xf32>
    %c0_20 = arith.constant 0 : index
    %c0_21 = arith.constant 0 : index
    %22 = vector.load %arg10[%c0_20, %c0_21] : memref<48x1xf32, #tpu.memory_space<vmem>>, vector<48x1xf32>
    %23 = vector.broadcast %22 : vector<48x1xf32> to vector<48x128xf32>
    %24 = arith.addf %21, %23 : vector<48x128xf32>
    %25 = math.tanh %24 : vector<48x128xf32>
    %c0_22 = arith.constant 0 : index
    %c0_23 = arith.constant 0 : index
    %26 = vector.load %arg11[%c0_22, %c0_23] : memref<40x48xf32, #tpu.memory_space<vmem>>, vector<40x48xf32>
    %cst_24 = arith.constant dense<0.000000e+00> : vector<40x128xf32>
    %27 = tpu.matmul %26, %25, %cst_24 {dimension_numbers = #tpu.dot_dimension_numbers<[1], [0], [0], [1], [0, 0, 1, 1], [], []>} : vector<40x48xf32>, vector<48x128xf32>, vector<40x128xf32> -> vector<40x128xf32>
    %c0_25 = arith.constant 0 : index
    %c0_26 = arith.constant 0 : index
    %28 = vector.load %arg12[%c0_25, %c0_26] : memref<40x1xf32, #tpu.memory_space<vmem>>, vector<40x1xf32>
    %29 = vector.broadcast %28 : vector<40x1xf32> to vector<40x128xf32>
    %30 = arith.addf %27, %29 : vector<40x128xf32>
    %31 = math.tanh %30 : vector<40x128xf32>
    %c0_27 = arith.constant 0 : index
    %c0_28 = arith.constant 0 : index
    %32 = vector.load %arg13[%c0_27, %c0_28] : memref<32x40xf32, #tpu.memory_space<vmem>>, vector<32x40xf32>
    %cst_29 = arith.constant dense<0.000000e+00> : vector<32x128xf32>
    %33 = tpu.matmul %32, %31, %cst_29 {dimension_numbers = #tpu.dot_dimension_numbers<[1], [0], [0], [1], [0, 0, 1, 1], [], []>} : vector<32x40xf32>, vector<40x128xf32>, vector<32x128xf32> -> vector<32x128xf32>
    %c0_30 = arith.constant 0 : index
    %c0_31 = arith.constant 0 : index
    %34 = vector.load %arg14[%c0_30, %c0_31] : memref<32x1xf32, #tpu.memory_space<vmem>>, vector<32x1xf32>
    %35 = vector.broadcast %34 : vector<32x1xf32> to vector<32x128xf32>
    %36 = arith.addf %33, %35 : vector<32x128xf32>
    %c0_32 = arith.constant 0 : index
    %c0_33 = arith.constant 0 : index
    %37 = vector.load %arg15[%c0_32, %c0_33] : memref<32x128xf32, #tpu.memory_space<vmem>>, vector<32x128xf32>
    tpu.vector_store %arg15[%c0_32, %c0_33], %36 {strides = array<i32>} : memref<32x128xf32, #tpu.memory_space<vmem>>, vector<32x128xf32>,
    return
  }
  func.func @transform_0(%arg0: i32) -> (i32, i32) {
    %c0_i32 = arith.constant 0 : i32
    %c0_i32_0 = arith.constant 0 : i32
    return %c0_i32, %arg0 : i32, i32
  }
  func.func @transform_1(%arg0: i32) -> (i32, i32) {
    %c0_i32 = arith.constant 0 : i32
    %c0_i32_0 = arith.constant 0 : i32
    return %c0_i32, %arg0 : i32, i32
  }
  func.func @transform_2(%arg0: i32) -> (i32, i32) {
    %c0_i32 = arith.constant 0 : i32
    %c0_i32_0 = arith.constant 0 : i32
    %c0_i32_1 = arith.constant 0 : i32
    return %c0_i32, %c0_i32_0 : i32, i32
  }
  func.func @transform_3(%arg0: i32) -> (i32, i32) {
    %c0_i32 = arith.constant 0 : i32
    %c0_i32_0 = arith.constant 0 : i32
    %c0_i32_1 = arith.constant 0 : i32
    return %c0_i32, %c0_i32_0 : i32, i32
  }
  func.func @transform_4(%arg0: i32) -> (i32, i32) {
    %c0_i32 = arith.constant 0 : i32
    %c0_i32_0 = arith.constant 0 : i32
    %c0_i32_1 = arith.constant 0 : i32
    return %c0_i32, %c0_i32_0 : i32, i32
  }
  func.func @transform_5(%arg0: i32) -> (i32, i32) {
    %c0_i32 = arith.constant 0 : i32
    %c0_i32_0 = arith.constant 0 : i32
    %c0_i32_1 = arith.constant 0 : i32
    return %c0_i32, %c0_i32_0 : i32, i32
  }
  func.func @transform_6(%arg0: i32) -> (i32, i32) {
    %c0_i32 = arith.constant 0 : i32
    %c0_i32_0 = arith.constant 0 : i32
    %c0_i32_1 = arith.constant 0 : i32
    return %c0_i32, %c0_i32_0 : i32, i32
  }
  func.func @transform_7(%arg0: i32) -> (i32, i32) {
    %c0_i32 = arith.constant 0 : i32
    %c0_i32_0 = arith.constant 0 : i32
    %c0_i32_1 = arith.constant 0 : i32
    return %c0_i32, %c0_i32_0 : i32, i32
  }
  func.func @transform_8(%arg0: i32) -> (i32, i32) {
    %c0_i32 = arith.constant 0 : i32
    %c0_i32_0 = arith.constant 0 : i32
    %c0_i32_1 = arith.constant 0 : i32
    return %c0_i32, %c0_i32_0 : i32, i32
  }
  func.func @transform_9(%arg0: i32) -> (i32, i32) {
    %c0_i32 = arith.constant 0 : i32
    %c0_i32_0 = arith.constant 0 : i32
    %c0_i32_1 = arith.constant 0 : i32
    return %c0_i32, %c0_i32_0 : i32, i32
  }
  func.func @transform_10(%arg0: i32) -> (i32, i32) {
    %c0_i32 = arith.constant 0 : i32
    %c0_i32_0 = arith.constant 0 : i32
    %c0_i32_1 = arith.constant 0 : i32
    return %c0_i32, %c0_i32_0 : i32, i32
  }
  func.func @transform_11(%arg0: i32) -> (i32, i32) {
    %c0_i32 = arith.constant 0 : i32
    %c0_i32_0 = arith.constant 0 : i32
    %c0_i32_1 = arith.constant 0 : i32
    return %c0_i32, %c0_i32_0 : i32, i32
  }
  func.func @transform_12(%arg0: i32) -> (i32, i32) {
    %c0_i32 = arith.constant 0 : i32
    %c0_i32_0 = arith.constant 0 : i32
    %c0_i32_1 = arith.constant 0 : i32
    return %c0_i32, %c0_i32_0 : i32, i32
  }
  func.func @transform_13(%arg0: i32) -> (i32, i32) {
    %c0_i32 = arith.constant 0 : i32
    %c0_i32_0 = arith.constant 0 : i32
    %c0_i32_1 = arith.constant 0 : i32
    return %c0_i32, %c0_i32_0 : i32, i32
  }
  func.func @transform_14(%arg0: i32) -> (i32, i32) {
    %c0_i32 = arith.constant 0 : i32
    %c0_i32_0 = arith.constant 0 : i32
    return %c0_i32, %arg0 : i32, i32
  }
}

</mosaic_0001>

<llo_original>
// kernel: tpu_custom_call.1
$region0: #{tpu_custom_call.1}
  #allocation0 [shape = 'u32[]', space=smem, size = 0x4, offset = 0x4, fixed_abs, tag = 'smem constant byte address 0x4 - core index']
  #allocation1 [shape = 'u32[144,128]{1,0:T(1,128)}', space=vmem, size = 0x12000, scoped, tag = 'internal scratch']
  %s0 = inlined_call_operand.vmem [shape: f32[32,128], index: 0, kind: input, shape index: {}]
  %s1 = inlined_call_operand.vmem [shape: f32[32,128], index: 1, kind: input, shape index: {}]
  %s2 = inlined_call_operand.vmem [shape: f32[40,32], index: 2, kind: input, shape index: {}]
  %s3 = inlined_call_operand.vmem [shape: f32[40,1], index: 3, kind: input, shape index: {}]
  %s4 = inlined_call_operand.vmem [shape: f32[48,40], index: 4, kind: input, shape index: {}]
  %s5 = inlined_call_operand.vmem [shape: f32[48,1], index: 5, kind: input, shape index: {}]
  %s6 = inlined_call_operand.vmem [shape: f32[56,48], index: 6, kind: input, shape index: {}]
  %s7 = inlined_call_operand.vmem [shape: f32[56,1], index: 7, kind: input, shape index: {}]
  %s8 = inlined_call_operand.vmem [shape: f32[48,56], index: 8, kind: input, shape index: {}]
  %s9 = inlined_call_operand.vmem [shape: f32[48,1], index: 9, kind: input, shape index: {}]
  %s10 = inlined_call_operand.vmem [shape: f32[40,48], index: 10, kind: input, shape index: {}]
  %s11 = inlined_call_operand.vmem [shape: f32[40,1], index: 11, kind: input, shape index: {}]
  %s12 = inlined_call_operand.vmem [shape: f32[32,40], index: 12, kind: input, shape index: {}]
  %s13 = inlined_call_operand.vmem [shape: f32[32,1], index: 13, kind: input, shape index: {}]
  %s14 = inlined_call_operand.hbm [shape: f32[32,128], index: 14, kind: output, shape index: {}]
  %s15 = sld [smem:[#allocation0]]
  $region66: #{tpu_custom_call.1} parent=0
    _
  %s17 = ssub.s32 1, %s15
  %s18 = scalar_select 0, %s17, %s15
  $region1: #{tpu_custom_call.1} parent=0
    #allocation2 [shape = 'u8[16384]{0}', space=vmem, size = 0x4000, scoped, tag = 'output window, operand 0, single buffered']
    #allocation3 [shape = 's32[1]{0}', space=sflag, size = 0x4, scoped, tag = 'scoped memory for tpu_custom_call.1']
    %19 = vsyncpa [#allocation3], 0
    // Predicated region
    $region2: #{tpu_custom_call.1} parent=1 // pred_check
      _
    $region3: #{tpu_custom_call.1} parent=1 // pred_check_branch
      %21 = sbr.rel (0) target = $region5
    $region4: #{tpu_custom_call.1} parent=1 // pred_region
      _
    $region5: #{tpu_custom_call.1} parent=1 // pred_fallthru
      _
    // Predicated region
    $region6: #{tpu_custom_call.1} parent=1 // pred_check
      _
    $region7: #{tpu_custom_call.1} parent=1 // pred_check_branch
      %23 = sbr.rel (0) target = $region9
    $region8: #{tpu_custom_call.1} parent=1 // pred_region
      _
    $region9: #{tpu_custom_call.1} parent=1 // pred_fallthru
      _
    // Predicated region
    $region10: #{tpu_custom_call.1} parent=1 // pred_check
      _
    $region11: #{tpu_custom_call.1} parent=1 // pred_check_branch
      %25 = sbr.rel (0) target = $region13
    $region12: #{tpu_custom_call.1} parent=1 // pred_region
      _
    $region13: #{tpu_custom_call.1} parent=1 // pred_fallthru
      _
    // Predicated region
    $region14: #{tpu_custom_call.1} parent=1 // pred_check
      _
    $region15: #{tpu_custom_call.1} parent=1 // pred_check_branch
      %27 = sbr.rel (0) target = $region17
    $region16: #{tpu_custom_call.1} parent=1 // pred_region
      _
    $region17: #{tpu_custom_call.1} parent=1 // pred_fallthru
      _
    // Predicated region
    $region18: #{tpu_custom_call.1} parent=1 // pred_check
      _
    $region19: #{tpu_custom_call.1} parent=1 // pred_check_branch
      %29 = sbr.rel (0) target = $region21
    $region20: #{tpu_custom_call.1} parent=1 // pred_region
      _
    $region21: #{tpu_custom_call.1} parent=1 // pred_fallthru
      _
    // Predicated region
    $region22: #{tpu_custom_call.1} parent=1 // pred_check
      _
    $region23: #{tpu_custom_call.1} parent=1 // pred_check_branch
      %31 = sbr.rel (0) target = $region25
    $region24: #{tpu_custom_call.1} parent=1 // pred_region
      _
    $region25: #{tpu_custom_call.1} parent=1 // pred_fallthru
      _
    // Predicated region
    $region26: #{tpu_custom_call.1} parent=1 // pred_check
      _
    $region27: #{tpu_custom_call.1} parent=1 // pred_check_branch
      %33 = sbr.rel (0) target = $region29
    $region28: #{tpu_custom_call.1} parent=1 // pred_region
      _
    $region29: #{tpu_custom_call.1} parent=1 // pred_fallthru
      _
    // Predicated region
    $region30: #{tpu_custom_call.1} parent=1 // pred_check
      _
    $region31: #{tpu_custom_call.1} parent=1 // pred_check_branch
      %35 = sbr.rel (0) target = $region33
    $region32: #{tpu_custom_call.1} parent=1 // pred_region
      _
    $region33: #{tpu_custom_call.1} parent=1 // pred_fallthru
      _
    // Predicated region
    $region34: #{tpu_custom_call.1} parent=1 // pred_check
      _
    $region35: #{tpu_custom_call.1} parent=1 // pred_check_branch
      %37 = sbr.rel (0) target = $region37
    $region36: #{tpu_custom_call.1} parent=1 // pred_region
      _
    $region37: #{tpu_custom_call.1} parent=1 // pred_fallthru
      _
    // Predicated region
    $region38: #{tpu_custom_call.1} parent=1 // pred_check
      _
    $region39: #{tpu_custom_call.1} parent=1 // pred_check_branch
      %39 = sbr.rel (0) target = $region41
    $region40: #{tpu_custom_call.1} parent=1 // pred_region
      _
    $region41: #{tpu_custom_call.1} parent=1 // pred_fallthru
      _
    // Predicated region
    $region42: #{tpu_custom_call.1} parent=1 // pred_check
      _
    $region43: #{tpu_custom_call.1} parent=1 // pred_check_branch
      %41 = sbr.rel (0) target = $region45
    $region44: #{tpu_custom_call.1} parent=1 // pred_region
      _
    $region45: #{tpu_custom_call.1} parent=1 // pred_fallthru
      _
    // Predicated region
    $region46: #{tpu_custom_call.1} parent=1 // pred_check
      _
    $region47: #{tpu_custom_call.1} parent=1 // pred_check_branch
      %43 = sbr.rel (0) target = $region49
    $region48: #{tpu_custom_call.1} parent=1 // pred_region
      _
    $region49: #{tpu_custom_call.1} parent=1 // pred_fallthru
      _
    // Predicated region
    $region50: #{tpu_custom_call.1} parent=1 // pred_check
      _
    $region51: #{tpu_custom_call.1} parent=1 // pred_check_branch
      %45 = sbr.rel (0) target = $region53
    $region52: #{tpu_custom_call.1} parent=1 // pred_region
      _
    $region53: #{tpu_custom_call.1} parent=1 // pred_fallthru
      _
    // Predicated region
    $region54: #{tpu_custom_call.1} parent=1 // pred_check
      _
    $region55: #{tpu_custom_call.1} parent=1 // pred_check_branch
      %47 = sbr.rel (0) target = $region57
    $region56: #{tpu_custom_call.1} parent=1 // pred_region
      _
    $region57: #{tpu_custom_call.1} parent=1 // pred_fallthru
      _
    %v48 = vld [vmem:[%s0] sm:$0xff]
    %v49 = vld [vmem:[%s0 + $0x8] sm:$0xff]
    %v50 = vld [vmem:[%s0 + $0x10] sm:$0xff]
    %v51 = vld [vmem:[%s0 + $0x18] sm:$0xff]
    %v52 = vld [vmem:[%s1] sm:$0xff]
    %v53 = vld [vmem:[%s1 + $0x8] sm:$0xff]
    %v54 = vld [vmem:[%s1 + $0x10] sm:$0xff]
    %v55 = vld [vmem:[%s1 + $0x18] sm:$0xff]
    %v56 = vmul.f32 %v48, %v52
    %v57 = vmul.f32 %v49, %v53
    %v58 = vmul.f32 %v50, %v54
    %v59 = vmul.f32 %v51, %v55
    %v60 = vld [vmem:[%s2] sm:$0xff]
    %v61 = vld [vmem:[%s2 + $0x8] sm:$0xff]
    %v62 = vld [vmem:[%s2 + $0x10] sm:$0xff]
    %v63 = vld [vmem:[%s2 + $0x18] sm:$0xff]
    %v64 = vld [vmem:[%s2 + $0x20] sm:$0xff]
    %v65 = vld [vmem:[%s3] sm:$0xff]
    %v66 = vld [vmem:[%s3 + $0x8] sm:$0xff]
    %v67 = vld [vmem:[%s3 + $0x10] sm:$0xff]
    %v68 = vld [vmem:[%s3 + $0x18] sm:$0xff]
    %v69 = vld [vmem:[%s3 + $0x20] sm:$0xff]
    %71 = vset.pattern.permute.xlu0 0
    %72 = vperm.xlu0 %71, %v65
    %v73 = vpop.permute.xlu0 %72
    %76 = vset.pattern.permute.xlu0 0
    %77 = vperm.xlu0 %76, %v66
    %v78 = vpop.permute.xlu0 %77
    %81 = vset.pattern.permute.xlu0 0
    %82 = vperm.xlu0 %81, %v67
    %v83 = vpop.permute.xlu0 %82
    %86 = vset.pattern.permute.xlu0 0
    %87 = vperm.xlu0 %86, %v68
    %v88 = vpop.permute.xlu0 %87
    %91 = vset.pattern.permute.xlu0 0
    %92 = vperm.xlu0 %91, %v69
    %v93 = vpop.permute.xlu0 %92
    %vm95 = vcmask 261120
    %v97 = vsel %vm95, %v60, 0
    %v100 = vsel %vm95, %v61, 0
    %v103 = vsel %vm95, %v62, 0
    %v106 = vsel %vm95, %v63, 0
    %v109 = vsel %vm95, %v64, 0
    %111 = vmatprep.subr.mxu0 0.0
    %112 = vmatpush1.msra.mxu0 %v56
    %113 = vmatprep.subr.mxu0 0.0
    %114 = vmatpush1.msra.mxu0 %v57
    %115 = vmatprep.subr.mxu0 0.0
    %116 = vmatpush1.msra.mxu0 %v58
    %117 = vmatprep.subr.mxu0 0.0
    %118 = vmatpush1.msra.mxu0 %v59
    %119 = vmatprep.subr.mxu0 0.0
    %120 = vmatpush1.msra.mxu0 0.0
    %121 = vmatprep.subr.mxu0 0.0
    %122 = vmatpush1.msra.mxu0 0.0
    %123 = vmatprep.subr.mxu0 0.0
    %124 = vmatpush1.msra.mxu0 0.0
    %125 = vmatprep.subr.mxu0 0.0
    %126 = vmatpush1.msra.mxu0 0.0
    %127 = vmatprep.subr.mxu0 0.0
    %128 = vmatpush1.msra.mxu0 0.0
    %129 = vmatprep.subr.mxu0 0.0
    %130 = vmatpush1.msra.mxu0 0.0
    %131 = vmatprep.subr.mxu0 0.0
    %132 = vmatpush1.msra.mxu0 0.0
    %133 = vmatprep.subr.mxu0 0.0
    %134 = vmatpush1.msra.mxu0 0.0
    %135 = vmatprep.subr.mxu0 0.0
    %136 = vmatpush1.msra.mxu0 0.0
    %137 = vmatprep.subr.mxu0 0.0
    %138 = vmatpush1.msra.mxu0 0.0
    %139 = vmatprep.subr.mxu0 0.0
    %140 = vmatpush1.msra.mxu0 0.0
    %141 = vmatprep.subr.mxu0 0.0
    %142 = vmatpush1.msra.mxu0 0.0
    %143 = vmatprep.subr.mxu0 0.0
    %144 = vmatpush1.msra.mxu0 0.0
    %145 = vmatprep.subr.mxu0 0.0
    %146 = vmatpush1.msra.mxu0 0.0
    %147 = vmatprep.subr.mxu0 0.0
    %148 = vmatpush1.msra.mxu0 0.0
    %149 = vmatprep.subr.mxu0 0.0
    %150 = vmatpush1.msra.mxu0 0.0
    %151 = vmatprep.subr.mxu0 0.0
    %152 = vmatpush1.msra.mxu0 0.0
    %153 = vmatprep.subr.mxu0 0.0
    %154 = vmatpush1.msra.mxu0 0.0
    %155 = vmatprep.subr.mxu0 0.0
    %156 = vmatpush1.msra.mxu0 0.0
    %157 = vmatprep.subr.mxu0 0.0
    %158 = vmatpush1.msra.mxu0 0.0
    %159 = vmatprep.subr.mxu0 0.0
    %160 = vmatpush1.msra.mxu0 0.0
    %161 = vmatprep.subr.mxu0 0.0
    %162 = vmatpush1.msra.mxu0 0.0
    %163 = vmatprep.subr.mxu0 0.0
    %164 = vmatpush1.msra.mxu0 0.0
    %165 = vmatprep.subr.mxu0 0.0
    %166 = vmatpush1.msra.mxu0 0.0
    %167 = vmatprep.subr.mxu0 0.0
    %168 = vmatpush1.msra.mxu0 0.0
    %169 = vmatprep.subr.mxu0 0.0
    %170 = vmatpush1.msra.mxu0 0.0
    %171 = vmatprep.subr.mxu0 0.0
    %172 = vmatpush1.msra.mxu0 0.0
    %173 = vmatprep.subr.mxu0 0.0
    %174 = vmatpush1.msra.mxu0 0.0
    %175 = vmatprep.mubr.f32.mxu0 0.0
    %176 = vmatmul.mubr.f32.gmra.mrb[0].mxu0 %v97
    %v177 = vpop.f32.mrb[0].mxu0
    %v178 = vadd.f32 %v73, %v177
    %v179 = vpop.f32.mrb[0].mxu0
    %180 = vmatprep.mubr.f32.mxu0 0.0
    %181 = vmatmul.mubr.f32.gmra.mrb[0].mxu0 %v100
    %v182 = vpop.f32.mrb[0].mxu0
    %v183 = vadd.f32 %v78, %v182
    %v184 = vpop.f32.mrb[0].mxu0
    %185 = vmatprep.mubr.f32.mxu0 0.0
    %186 = vmatmul.mubr.f32.gmra.mrb[0].mxu0 %v103
    %v187 = vpop.f32.mrb[0].mxu0
    %v188 = vadd.f32 %v83, %v187
    %v189 = vpop.f32.mrb[0].mxu0
    %190 = vmatprep.mubr.f32.mxu0 0.0
    %191 = vmatmul.mubr.f32.gmra.mrb[0].mxu0 %v106
    %v192 = vpop.f32.mrb[0].mxu0
    %v193 = vadd.f32 %v88, %v192
    %v194 = vpop.f32.mrb[0].mxu0
    %195 = vmatprep.mubr.f32.mxu0 0.0
    %196 = vmatmul.mubr.f32.gmra.mrb[0].mxu0 %v109
    %v197 = vpop.f32.mrb[0].mxu0
    %v198 = vadd.f32 %v93, %v197
    %v199 = vpop.f32.mrb[0].mxu0
    %200 = vdwg.mxu0
    %v201 = vtanh.pop %v178
    %v202 = vtanh.pop %v183
    %v203 = vtanh.pop %v188
    %v204 = vtanh.pop %v193
    %v205 = vtanh.pop %v198
    %v206 = vld [vmem:[%s4] sm:$0xff]
    %v207 = vld [vmem:[%s4 + $0x8] sm:$0xff]
    %v208 = vld [vmem:[%s4 + $0x10] sm:$0xff]
    %v209 = vld [vmem:[%s4 + $0x18] sm:$0xff]
    %v210 = vld [vmem:[%s4 + $0x20] sm:$0xff]
    %v211 = vld [vmem:[%s4 + $0x28] sm:$0xff]
    %v212 = vld [vmem:[%s5] sm:$0xff]
    %v213 = vld [vmem:[%s5 + $0x8] sm:$0xff]
    %v214 = vld [vmem:[%s5 + $0x10] sm:$0xff]
    %v215 = vld [vmem:[%s5 + $0x18] sm:$0xff]
    %v216 = vld [vmem:[%s5 + $0x20] sm:$0xff]
    %v217 = vld [vmem:[%s5 + $0x28] sm:$0xff]
    %219 = vset.pattern.permute.xlu0 0
    %220 = vperm.xlu0 %219, %v212
    %v221 = vpop.permute.xlu0 %220
    %224 = vset.pattern.permute.xlu0 0
    %225 = vperm.xlu0 %224, %v213
    %v226 = vpop.permute.xlu0 %225
    %229 = vset.pattern.permute.xlu0 0
    %230 = vperm.xlu0 %229, %v214
    %v231 = vpop.permute.xlu0 %230
    %234 = vset.pattern.permute.xlu0 0
    %235 = vperm.xlu0 %234, %v215
    %v236 = vpop.permute.xlu0 %235
    %239 = vset.pattern.permute.xlu0 0
    %240 = vperm.xlu0 %239, %v216
    %v241 = vpop.permute.xlu0 %240
    %244 = vset.pattern.permute.xlu0 0
    %245 = vperm.xlu0 %244, %v217
    %v246 = vpop.permute.xlu0 %245
    %vm248 = vcmask 326656
    %v250 = vsel %vm248, %v206, 0
    %v253 = vsel %vm248, %v207, 0
    %v256 = vsel %vm248, %v208, 0
    %v259 = vsel %vm248, %v209, 0
    %v262 = vsel %vm248, %v210, 0
    %v265 = vsel %vm248, %v211, 0
    %267 = vmatprep.subr.mxu0 0.0
    %268 = vmatpush1.msra.mxu0 %v201
    %269 = vmatprep.subr.mxu0 0.0
    %270 = vmatpush1.msra.mxu0 %v202
    %271 = vmatprep.subr.mxu0 0.0
    %272 = vmatpush1.msra.mxu0 %v203
    %273 = vmatprep.subr.mxu0 0.0
    %274 = vmatpush1.msra.mxu0 %v204
    %275 = vmatprep.subr.mxu0 0.0
    %276 = vmatpush1.msra.mxu0 %v205
    %277 = vmatprep.subr.mxu0 0.0
    %278 = vmatpush1.msra.mxu0 0.0
    %279 = vmatprep.subr.mxu0 0.0
    %280 = vmatpush1.msra.mxu0 0.0
    %281 = vmatprep.subr.mxu0 0.0
    %282 = vmatpush1.msra.mxu0 0.0
    %283 = vmatprep.subr.mxu0 0.0
    %284 = vmatpush1.msra.mxu0 0.0
    %285 = vmatprep.subr.mxu0 0.0
    %286 = vmatpush1.msra.mxu0 0.0
    %287 = vmatprep.subr.mxu0 0.0
    %288 = vmatpush1.msra.mxu0 0.0
    %289 = vmatprep.subr.mxu0 0.0
    %290 = vmatpush1.msra.mxu0 0.0
    %291 = vmatprep.subr.mxu0 0.0
    %292 = vmatpush1.msra.mxu0 0.0
    %293 = vmatprep.subr.mxu0 0.0
    %294 = vmatpush1.msra.mxu0 0.0
    %295 = vmatprep.subr.mxu0 0.0
    %296 = vmatpush1.msra.mxu0 0.0
    %297 = vmatprep.subr.mxu0 0.0
    %298 = vmatpush1.msra.mxu0 0.0
    %299 = vmatprep.subr.mxu0 0.0
    %300 = vmatpush1.msra.mxu0 0.0
    %301 = vmatprep.subr.mxu0 0.0
    %302 = vmatpush1.msra.mxu0 0.0
    %303 = vmatprep.subr.mxu0 0.0
    %304 = vmatpush1.msra.mxu0 0.0
    %305 = vmatprep.subr.mxu0 0.0
    %306 = vmatpush1.msra.mxu0 0.0
    %307 = vmatprep.subr.mxu0 0.0
    %308 = vmatpush1.msra.mxu0 0.0
    %309 = vmatprep.subr.mxu0 0.0
    %310 = vmatpush1.msra.mxu0 0.0
    %311 = vmatprep.subr.mxu0 0.0
    %312 = vmatpush1.msra.mxu0 0.0
    %313 = vmatprep.subr.mxu0 0.0
    %314 = vmatpush1.msra.mxu0 0.0
    %315 = vmatprep.subr.mxu0 0.0
    %316 = vmatpush1.msra.mxu0 0.0
    %317 = vmatprep.subr.mxu0 0.0
    %318 = vmatpush1.msra.mxu0 0.0
    %319 = vmatprep.subr.mxu0 0.0
    %320 = vmatpush1.msra.mxu0 0.0
    %321 = vmatprep.subr.mxu0 0.0
    %322 = vmatpush1.msra.mxu0 0.0
    %323 = vmatprep.subr.mxu0 0.0
    %324 = vmatpush1.msra.mxu0 0.0
    %325 = vmatprep.subr.mxu0 0.0
    %326 = vmatpush1.msra.mxu0 0.0
    %327 = vmatprep.subr.mxu0 0.0
    %328 = vmatpush1.msra.mxu0 0.0
    %329 = vmatprep.subr.mxu0 0.0
    %330 = vmatpush1.msra.mxu0 0.0
    %331 = vmatprep.mubr.f32.mxu0 0.0
    %332 = vmatmul.mubr.f32.gmra.mrb[0].mxu0 %v250
    %v333 = vpop.f32.mrb[0].mxu0
    %v334 = vadd.f32 %v221, %v333
    %v335 = vpop.f32.mrb[0].mxu0
    %336 = vmatprep.mubr.f32.mxu0 0.0
    %337 = vmatmul.mubr.f32.gmra.mrb[0].mxu0 %v253
    %v338 = vpop.f32.mrb[0].mxu0
    %v339 = vadd.f32 %v226, %v338
    %v340 = vpop.f32.mrb[0].mxu0
    %341 = vmatprep.mubr.f32.mxu0 0.0
    %342 = vmatmul.mubr.f32.gmra.mrb[0].mxu0 %v256
    %v343 = vpop.f32.mrb[0].mxu0
    %v344 = vadd.f32 %v231, %v343
    %v345 = vpop.f32.mrb[0].mxu0
    %346 = vmatprep.mubr.f32.mxu0 0.0
    %347 = vmatmul.mubr.f32.gmra.mrb[0].mxu0 %v259
    %v348 = vpop.f32.mrb[0].mxu0
    %v349 = vadd.f32 %v236, %v348
    %v350 = vpop.f32.mrb[0].mxu0
    %351 = vmatprep.mubr.f32.mxu0 0.0
    %352 = vmatmul.mubr.f32.gmra.mrb[0].mxu0 %v262
    %v353 = vpop.f32.mrb[0].mxu0
    %v354 = vadd.f32 %v241, %v353
    %v355 = vpop.f32.mrb[0].mxu0
    %356 = vmatprep.mubr.f32.mxu0 0.0
    %357 = vmatmul.mubr.f32.gmra.mrb[0].mxu0 %v265
    %v358 = vpop.f32.mrb[0].mxu0
    %v359 = vadd.f32 %v246, %v358
    %v360 = vpop.f32.mrb[0].mxu0
    %361 = vdwg.mxu0
    %v362 = vtanh.pop %v334
    %v363 = vtanh.pop %v339
    %v364 = vtanh.pop %v344
    %v365 = vtanh.pop %v349
    %v366 = vtanh.pop %v354
    %v367 = vtanh.pop %v359
    %v368 = vld [vmem:[%s6] sm:$0xff]
    %v369 = vld [vmem:[%s6 + $0x8] sm:$0xff]
    %v370 = vld [vmem:[%s6 + $0x10] sm:$0xff]
    %v371 = vld [vmem:[%s6 + $0x18] sm:$0xff]
    %v372 = vld [vmem:[%s6 + $0x20] sm:$0xff]
    %v373 = vld [vmem:[%s6 + $0x28] sm:$0xff]
    %v374 = vld [vmem:[%s6 + $0x30] sm:$0xff]
    %v375 = vld [vmem:[%s7] sm:$0xff]
    %v376 = vld [vmem:[%s7 + $0x8] sm:$0xff]
    %v377 = vld [vmem:[%s7 + $0x10] sm:$0xff]
    %v378 = vld [vmem:[%s7 + $0x18] sm:$0xff]
    %v379 = vld [vmem:[%s7 + $0x20] sm:$0xff]
    %v380 = vld [vmem:[%s7 + $0x28] sm:$0xff]
    %v381 = vld [vmem:[%s7 + $0x30] sm:$0xff]
    %383 = vset.pattern.permute.xlu0 0
    %384 = vperm.xlu0 %383, %v375
    %v385 = vpop.permute.xlu0 %384
    %388 = vset.pattern.permute.xlu0 0
    %389 = vperm.xlu0 %388, %v376
    %v390 = vpop.permute.xlu0 %389
    %393 = vset.pattern.permute.xlu0 0
    %394 = vperm.xlu0 %393, %v377
    %v395 = vpop.permute.xlu0 %394
    %398 = vset.pattern.permute.xlu0 0
    %399 = vperm.xlu0 %398, %v378
    %v400 = vpop.permute.xlu0 %399
    %403 = vset.pattern.permute.xlu0 0
    %404 = vperm.xlu0 %403, %v379
    %v405 = vpop.permute.xlu0 %404
    %408 = vset.pattern.permute.xlu0 0
    %409 = vperm.xlu0 %408, %v380
    %v410 = vpop.permute.xlu0 %409
    %413 = vset.pattern.permute.xlu0 0
    %414 = vperm.xlu0 %413, %v381
    %v415 = vpop.permute.xlu0 %414
    %vm417 = vcmask 392192
    %v419 = vsel %vm417, %v368, 0
    %v422 = vsel %vm417, %v369, 0
    %v425 = vsel %vm417, %v370, 0
    %v428 = vsel %vm417, %v371, 0
    %v431 = vsel %vm417, %v372, 0
    %v434 = vsel %vm417, %v373, 0
    %v437 = vsel %vm417, %v374, 0
    %439 = vmatprep.subr.mxu0 0.0
    %440 = vmatpush1.msra.mxu0 %v362
    %441 = vmatprep.subr.mxu0 0.0
    %442 = vmatpush1.msra.mxu0 %v363
    %443 = vmatprep.subr.mxu0 0.0
    %444 = vmatpush1.msra.mxu0 %v364
    %445 = vmatprep.subr.mxu0 0.0
    %446 = vmatpush1.msra.mxu0 %v365
    %447 = vmatprep.subr.mxu0 0.0
    %448 = vmatpush1.msra.mxu0 %v366
    %449 = vmatprep.subr.mxu0 0.0
    %450 = vmatpush1.msra.mxu0 %v367
    %451 = vmatprep.subr.mxu0 0.0
    %452 = vmatpush1.msra.mxu0 0.0
    %453 = vmatprep.subr.mxu0 0.0
    %454 = vmatpush1.msra.mxu0 0.0
    %455 = vmatprep.subr.mxu0 0.0
    %456 = vmatpush1.msra.mxu0 0.0
    %457 = vmatprep.subr.mxu0 0.0
    %458 = vmatpush1.msra.mxu0 0.0
    %459 = vmatprep.subr.mxu0 0.0
    %460 = vmatpush1.msra.mxu0 0.0
    %461 = vmatprep.subr.mxu0 0.0
    %462 = vmatpush1.msra.mxu0 0.0
    %463 = vmatprep.subr.mxu0 0.0
    %464 = vmatpush1.msra.mxu0 0.0
    %465 = vmatprep.subr.mxu0 0.0
    %466 = vmatpush1.msra.mxu0 0.0
    %467 = vmatprep.subr.mxu0 0.0
    %468 = vmatpush1.msra.mxu0 0.0
    %469 = vmatprep.subr.mxu0 0.0
    %470 = vmatpush1.msra.mxu0 0.0
    %471 = vmatprep.subr.mxu0 0.0
    %472 = vmatpush1.msra.mxu0 0.0
    %473 = vmatprep.subr.mxu0 0.0
    %474 = vmatpush1.msra.mxu0 0.0
    %475 = vmatprep.subr.mxu0 0.0
    %476 = vmatpush1.msra.mxu0 0.0
    %477 = vmatprep.subr.mxu0 0.0
    %478 = vmatpush1.msra.mxu0 0.0
    %479 = vmatprep.subr.mxu0 0.0
    %480 = vmatpush1.msra.mxu0 0.0
    %481 = vmatprep.subr.mxu0 0.0
    %482 = vmatpush1.msra.mxu0 0.0
    %483 = vmatprep.subr.mxu0 0.0
    %484 = vmatpush1.msra.mxu0 0.0
    %485 = vmatprep.subr.mxu0 0.0
    %486 = vmatpush1.msra.mxu0 0.0
    %487 = vmatprep.subr.mxu0 0.0
    %488 = vmatpush1.msra.mxu0 0.0
    %489 = vmatprep.subr.mxu0 0.0
    %490 = vmatpush1.msra.mxu0 0.0
    %491 = vmatprep.subr.mxu0 0.0
    %492 = vmatpush1.msra.mxu0 0.0
    %493 = vmatprep.subr.mxu0 0.0
    %494 = vmatpush1.msra.mxu0 0.0
    %495 = vmatprep.subr.mxu0 0.0
    %496 = vmatpush1.msra.mxu0 0.0
    %497 = vmatprep.subr.mxu0 0.0
    %498 = vmatpush1.msra.mxu0 0.0
    %499 = vmatprep.subr.mxu0 0.0
    %500 = vmatpush1.msra.mxu0 0.0
    %501 = vmatprep.subr.mxu0 0.0
    %502 = vmatpush1.msra.mxu0 0.0
    %503 = vmatprep.mubr.f32.mxu0 0.0
    %504 = vmatmul.mubr.f32.gmra.mrb[0].mxu0 %v419
    %v505 = vpop.f32.mrb[0].mxu0
    %v506 = vadd.f32 %v385, %v505
    %v507 = vpop.f32.mrb[0].mxu0
    %508 = vmatprep.mubr.f32.mxu0 0.0
    %509 = vmatmul.mubr.f32.gmra.mrb[0].mxu0 %v422
    %v510 = vpop.f32.mrb[0].mxu0
    %v511 = vadd.f32 %v390, %v510
    %v512 = vpop.f32.mrb[0].mxu0
    %513 = vmatprep.mubr.f32.mxu0 0.0
    %514 = vmatmul.mubr.f32.gmra.mrb[0].mxu0 %v425
    %v515 = vpop.f32.mrb[0].mxu0
    %v516 = vadd.f32 %v395, %v515
    %v517 = vpop.f32.mrb[0].mxu0
    %518 = vmatprep.mubr.f32.mxu0 0.0
    %519 = vmatmul.mubr.f32.gmra.mrb[0].mxu0 %v428
    %v520 = vpop.f32.mrb[0].mxu0
    %v521 = vadd.f32 %v400, %v520
    %v522 = vpop.f32.mrb[0].mxu0
    %523 = vmatprep.mubr.f32.mxu0 0.0
    %524 = vmatmul.mubr.f32.gmra.mrb[0].mxu0 %v431
    %v525 = vpop.f32.mrb[0].mxu0
    %v526 = vadd.f32 %v405, %v525
    %v527 = vpop.f32.mrb[0].mxu0
    %528 = vmatprep.mubr.f32.mxu0 0.0
    %529 = vmatmul.mubr.f32.gmra.mrb[0].mxu0 %v434
    %v530 = vpop.f32.mrb[0].mxu0
    %v531 = vadd.f32 %v410, %v530
    %v532 = vpop.f32.mrb[0].mxu0
    %533 = vmatprep.mubr.f32.mxu0 0.0
    %534 = vmatmul.mubr.f32.gmra.mrb[0].mxu0 %v437
    %v535 = vpop.f32.mrb[0].mxu0
    %v536 = vadd.f32 %v415, %v535
    %v537 = vpop.f32.mrb[0].mxu0
    %538 = vdwg.mxu0
    %v539 = vld [vmem:[%s8] sm:$0xff]
    %v540 = vld [vmem:[%s8 + $0x8] sm:$0xff]
    %v541 = vld [vmem:[%s8 + $0x10] sm:$0xff]
    %v542 = vld [vmem:[%s8 + $0x18] sm:$0xff]
    %v543 = vld [vmem:[%s8 + $0x20] sm:$0xff]
    %v544 = vld [vmem:[%s8 + $0x28] sm:$0xff]
    %v545 = vld [vmem:[%s9] sm:$0xff]
    %v546 = vld [vmem:[%s9 + $0x8] sm:$0xff]
    %v547 = vld [vmem:[%s9 + $0x10] sm:$0xff]
    %v548 = vld [vmem:[%s9 + $0x18] sm:$0xff]
    %v549 = vld [vmem:[%s9 + $0x20] sm:$0xff]
    %v550 = vld [vmem:[%s9 + $0x28] sm:$0xff]
    %552 = vset.pattern.permute.xlu0 0
    %553 = vperm.xlu0 %552, %v545
    %v554 = vpop.permute.xlu0 %553
    %557 = vset.pattern.permute.xlu0 0
    %558 = vperm.xlu0 %557, %v546
    %v559 = vpop.permute.xlu0 %558
    %562 = vset.pattern.permute.xlu0 0
    %563 = vperm.xlu0 %562, %v547
    %v564 = vpop.permute.xlu0 %563
    %567 = vset.pattern.permute.xlu0 0
    %568 = vperm.xlu0 %567, %v548
    %v569 = vpop.permute.xlu0 %568
    %572 = vset.pattern.permute.xlu0 0
    %573 = vperm.xlu0 %572, %v549
    %v574 = vpop.permute.xlu0 %573
    %577 = vset.pattern.permute.xlu0 0
    %578 = vperm.xlu0 %577, %v550
    %v579 = vpop.permute.xlu0 %578
    %vm581 = vcmask 457728
    %v583 = vsel %vm581, %v539, 0
    %v586 = vsel %vm581, %v540, 0
    %v589 = vsel %vm581, %v541, 0
    %v592 = vsel %vm581, %v542, 0
    %v595 = vsel %vm581, %v543, 0
    %v598 = vsel %vm581, %v544, 0
    %600 = vmatprep.subr.mxu0 0.0
    %601 = vmatpush1.msra.mxu0 %v506
    %602 = vmatprep.subr.mxu0 0.0
    %603 = vmatpush1.msra.mxu0 %v511
    %604 = vmatprep.subr.mxu0 0.0
    %605 = vmatpush1.msra.mxu0 %v516
    %606 = vmatprep.subr.mxu0 0.0
    %607 = vmatpush1.msra.mxu0 %v521
    %608 = vmatprep.subr.mxu0 0.0
    %609 = vmatpush1.msra.mxu0 %v526
    %610 = vmatprep.subr.mxu0 0.0
    %611 = vmatpush1.msra.mxu0 %v531
    %612 = vmatprep.subr.mxu0 0.0
    %613 = vmatpush1.msra.mxu0 %v536
    %614 = vmatprep.subr.mxu0 0.0
    %615 = vmatpush1.msra.mxu0 0.0
    %616 = vmatprep.subr.mxu0 0.0
    %617 = vmatpush1.msra.mxu0 0.0
    %618 = vmatprep.subr.mxu0 0.0
    %619 = vmatpush1.msra.mxu0 0.0
    %620 = vmatprep.subr.mxu0 0.0
    %621 = vmatpush1.msra.mxu0 0.0
    %622 = vmatprep.subr.mxu0 0.0
    %623 = vmatpush1.msra.mxu0 0.0
    %624 = vmatprep.subr.mxu0 0.0
    %625 = vmatpush1.msra.mxu0 0.0
    %626 = vmatprep.subr.mxu0 0.0
    %627 = vmatpush1.msra.mxu0 0.0
    %628 = vmatprep.subr.mxu0 0.0
    %629 = vmatpush1.msra.mxu0 0.0
    %630 = vmatprep.subr.mxu0 0.0
    %631 = vmatpush1.msra.mxu0 0.0
    %632 = vmatprep.subr.mxu0 0.0
    %633 = vmatpush1.msra.mxu0 0.0
    %634 = vmatprep.subr.mxu0 0.0
    %635 = vmatpush1.msra.mxu0 0.0
    %636 = vmatprep.subr.mxu0 0.0
    %637 = vmatpush1.msra.mxu0 0.0
    %638 = vmatprep.subr.mxu0 0.0
    %639 = vmatpush1.msra.mxu0 0.0
    %640 = vmatprep.subr.mxu0 0.0
    %641 = vmatpush1.msra.mxu0 0.0
    %642 = vmatprep.subr.mxu0 0.0
    %643 = vmatpush1.msra.mxu0 0.0
    %644 = vmatprep.subr.mxu0 0.0
    %645 = vmatpush1.msra.mxu0 0.0
    %646 = vmatprep.subr.mxu0 0.0
    %647 = vmatpush1.msra.mxu0 0.0
    %648 = vmatprep.subr.mxu0 0.0
    %649 = vmatpush1.msra.mxu0 0.0
    %650 = vmatprep.subr.mxu0 0.0
    %651 = vmatpush1.msra.mxu0 0.0
    %652 = vmatprep.subr.mxu0 0.0
    %653 = vmatpush1.msra.mxu0 0.0
    %654 = vmatprep.subr.mxu0 0.0
    %655 = vmatpush1.msra.mxu0 0.0
    %656 = vmatprep.subr.mxu0 0.0
    %657 = vmatpush1.msra.mxu0 0.0
    %658 = vmatprep.subr.mxu0 0.0
    %659 = vmatpush1.msra.mxu0 0.0
    %660 = vmatprep.subr.mxu0 0.0
    %661 = vmatpush1.msra.mxu0 0.0
    %662 = vmatprep.subr.mxu0 0.0
    %663 = vmatpush1.msra.mxu0 0.0
    %664 = vmatprep.mubr.f32.mxu0 0.0
    %665 = vmatmul.mubr.f32.gmra.mrb[0].mxu0 %v583
    %v666 = vpop.f32.mrb[0].mxu0
    %v667 = vadd.f32 %v554, %v666
    %v668 = vpop.f32.mrb[0].mxu0
    %669 = vmatprep.mubr.f32.mxu0 0.0
    %670 = vmatmul.mubr.f32.gmra.mrb[0].mxu0 %v586
    %v671 = vpop.f32.mrb[0].mxu0
    %v672 = vadd.f32 %v559, %v671
    %v673 = vpop.f32.mrb[0].mxu0
    %674 = vmatprep.mubr.f32.mxu0 0.0
    %675 = vmatmul.mubr.f32.gmra.mrb[0].mxu0 %v589
    %v676 = vpop.f32.mrb[0].mxu0
    %v677 = vadd.f32 %v564, %v676
    %v678 = vpop.f32.mrb[0].mxu0
    %679 = vmatprep.mubr.f32.mxu0 0.0
    %680 = vmatmul.mubr.f32.gmra.mrb[0].mxu0 %v592
    %v681 = vpop.f32.mrb[0].mxu0
    %v682 = vadd.f32 %v569, %v681
    %v683 = vpop.f32.mrb[0].mxu0
    %684 = vmatprep.mubr.f32.mxu0 0.0
    %685 = vmatmul.mubr.f32.gmra.mrb[0].mxu0 %v595
    %v686 = vpop.f32.mrb[0].mxu0
    %v687 = vadd.f32 %v574, %v686
    %v688 = vpop.f32.mrb[0].mxu0
    %689 = vmatprep.mubr.f32.mxu0 0.0
    %690 = vmatmul.mubr.f32.gmra.mrb[0].mxu0 %v598
    %v691 = vpop.f32.mrb[0].mxu0
    %v692 = vadd.f32 %v579, %v691
    %v693 = vpop.f32.mrb[0].mxu0
    %694 = vdwg.mxu0
    %v695 = vtanh.pop %v667
    %v696 = vtanh.pop %v672
    %v697 = vtanh.pop %v677
    %v698 = vtanh.pop %v682
    %v699 = vtanh.pop %v687
    %v700 = vtanh.pop %v692
    %v701 = vld [vmem:[%s10] sm:$0xff]
    %v702 = vld [vmem:[%s10 + $0x8] sm:$0xff]
    %v703 = vld [vmem:[%s10 + $0x10] sm:$0xff]
    %v704 = vld [vmem:[%s10 + $0x18] sm:$0xff]
    %v705 = vld [vmem:[%s10 + $0x20] sm:$0xff]
    %v706 = vld [vmem:[%s11] sm:$0xff]
    %v707 = vld [vmem:[%s11 + $0x8] sm:$0xff]
    %v708 = vld [vmem:[%s11 + $0x10] sm:$0xff]
    %v709 = vld [vmem:[%s11 + $0x18] sm:$0xff]
    %v710 = vld [vmem:[%s11 + $0x20] sm:$0xff]
    %712 = vset.pattern.permute.xlu0 0
    %713 = vperm.xlu0 %712, %v706
    %v714 = vpop.permute.xlu0 %713
    %717 = vset.pattern.permute.xlu0 0
    %718 = vperm.xlu0 %717, %v707
    %v719 = vpop.permute.xlu0 %718
    %722 = vset.pattern.permute.xlu0 0
    %723 = vperm.xlu0 %722, %v708
    %v724 = vpop.permute.xlu0 %723
    %727 = vset.pattern.permute.xlu0 0
    %728 = vperm.xlu0 %727, %v709
    %v729 = vpop.permute.xlu0 %728
    %732 = vset.pattern.permute.xlu0 0
    %733 = vperm.xlu0 %732, %v710
    %v734 = vpop.permute.xlu0 %733
    %v737 = vsel %vm417, %v701, 0
    %v740 = vsel %vm417, %v702, 0
    %v743 = vsel %vm417, %v703, 0
    %v746 = vsel %vm417, %v704, 0
    %v749 = vsel %vm417, %v705, 0
    %751 = vmatprep.subr.mxu0 0.0
    %752 = vmatpush1.msra.mxu0 %v695
    %753 = vmatprep.subr.mxu0 0.0
    %754 = vmatpush1.msra.mxu0 %v696
    %755 = vmatprep.subr.mxu0 0.0
    %756 = vmatpush1.msra.mxu0 %v697
    %757 = vmatprep.subr.mxu0 0.0
    %758 = vmatpush1.msra.mxu0 %v698
    %759 = vmatprep.subr.mxu0 0.0
    %760 = vmatpush1.msra.mxu0 %v699
    %761 = vmatprep.subr.mxu0 0.0
    %762 = vmatpush1.msra.mxu0 %v700
    %763 = vmatprep.subr.mxu0 0.0
    %764 = vmatpush1.msra.mxu0 0.0
    %765 = vmatprep.subr.mxu0 0.0
    %766 = vmatpush1.msra.mxu0 0.0
    %767 = vmatprep.subr.mxu0 0.0
    %768 = vmatpush1.msra.mxu0 0.0
    %769 = vmatprep.subr.mxu0 0.0
    %770 = vmatpush1.msra.mxu0 0.0
    %771 = vmatprep.subr.mxu0 0.0
    %772 = vmatpush1.msra.mxu0 0.0
    %773 = vmatprep.subr.mxu0 0.0
    %774 = vmatpush1.msra.mxu0 0.0
    %775 = vmatprep.subr.mxu0 0.0
    %776 = vmatpush1.msra.mxu0 0.0
    %777 = vmatprep.subr.mxu0 0.0
    %778 = vmatpush1.msra.mxu0 0.0
    %779 = vmatprep.subr.mxu0 0.0
    %780 = vmatpush1.msra.mxu0 0.0
    %781 = vmatprep.subr.mxu0 0.0
    %782 = vmatpush1.msra.mxu0 0.0
    %783 = vmatprep.subr.mxu0 0.0
    %784 = vmatpush1.msra.mxu0 0.0
    %785 = vmatprep.subr.mxu0 0.0
    %786 = vmatpush1.msra.mxu0 0.0
    %787 = vmatprep.subr.mxu0 0.0
    %788 = vmatpush1.msra.mxu0 0.0
    %789 = vmatprep.subr.mxu0 0.0
    %790 = vmatpush1.msra.mxu0 0.0
    %791 = vmatprep.subr.mxu0 0.0
    %792 = vmatpush1.msra.mxu0 0.0
    %793 = vmatprep.subr.mxu0 0.0
    %794 = vmatpush1.msra.mxu0 0.0
    %795 = vmatprep.subr.mxu0 0.0
    %796 = vmatpush1.msra.mxu0 0.0
    %797 = vmatprep.subr.mxu0 0.0
    %798 = vmatpush1.msra.mxu0 0.0
    %799 = vmatprep.subr.mxu0 0.0
    %800 = vmatpush1.msra.mxu0 0.0
    %801 = vmatprep.subr.mxu0 0.0
    %802 = vmatpush1.msra.mxu0 0.0
    %803 = vmatprep.subr.mxu0 0.0
    %804 = vmatpush1.msra.mxu0 0.0
    %805 = vmatprep.subr.mxu0 0.0
    %806 = vmatpush1.msra.mxu0 0.0
    %807 = vmatprep.subr.mxu0 0.0
    %808 = vmatpush1.msra.mxu0 0.0
    %809 = vmatprep.subr.mxu0 0.0
    %810 = vmatpush1.msra.mxu0 0.0
    %811 = vmatprep.subr.mxu0 0.0
    %812 = vmatpush1.msra.mxu0 0.0
    %813 = vmatprep.subr.mxu0 0.0
    %814 = vmatpush1.msra.mxu0 0.0
    %815 = vmatprep.mubr.f32.mxu0 0.0
    %816 = vmatmul.mubr.f32.gmra.mrb[0].mxu0 %v737
    %v817 = vpop.f32.mrb[0].mxu0
    %v818 = vadd.f32 %v714, %v817
    %v819 = vpop.f32.mrb[0].mxu0
    %820 = vmatprep.mubr.f32.mxu0 0.0
    %821 = vmatmul.mubr.f32.gmra.mrb[0].mxu0 %v740
    %v822 = vpop.f32.mrb[0].mxu0
    %v823 = vadd.f32 %v719, %v822
    %v824 = vpop.f32.mrb[0].mxu0
    %825 = vmatprep.mubr.f32.mxu0 0.0
    %826 = vmatmul.mubr.f32.gmra.mrb[0].mxu0 %v743
    %v827 = vpop.f32.mrb[0].mxu0
    %v828 = vadd.f32 %v724, %v827
    %v829 = vpop.f32.mrb[0].mxu0
    %830 = vmatprep.mubr.f32.mxu0 0.0
    %831 = vmatmul.mubr.f32.gmra.mrb[0].mxu0 %v746
    %v832 = vpop.f32.mrb[0].mxu0
    %v833 = vadd.f32 %v729, %v832
    %v834 = vpop.f32.mrb[0].mxu0
    %835 = vmatprep.mubr.f32.mxu0 0.0
    %836 = vmatmul.mubr.f32.gmra.mrb[0].mxu0 %v749
    %v837 = vpop.f32.mrb[0].mxu0
    %v838 = vadd.f32 %v734, %v837
    %v839 = vpop.f32.mrb[0].mxu0
    %840 = vdwg.mxu0
    %v841 = vtanh.pop %v818
    %v842 = vtanh.pop %v823
    %v843 = vtanh.pop %v828
    %v844 = vtanh.pop %v833
    %v845 = vtanh.pop %v838
    %v846 = vld [vmem:[%s12] sm:$0xff]
    %v847 = vld [vmem:[%s12 + $0x8] sm:$0xff]
    %v848 = vld [vmem:[%s12 + $0x10] sm:$0xff]
    %v849 = vld [vmem:[%s12 + $0x18] sm:$0xff]
    %v850 = vld [vmem:[%s13] sm:$0xff]
    %v851 = vld [vmem:[%s13 + $0x8] sm:$0xff]
    %v852 = vld [vmem:[%s13 + $0x10] sm:$0xff]
    %v853 = vld [vmem:[%s13 + $0x18] sm:$0xff]
    %855 = vset.pattern.permute.xlu0 0
    %856 = vperm.xlu0 %855, %v850
    %v857 = vpop.permute.xlu0 %856
    %860 = vset.pattern.permute.xlu0 0
    %861 = vperm.xlu0 %860, %v851
    %v862 = vpop.permute.xlu0 %861
    %865 = vset.pattern.permute.xlu0 0
    %866 = vperm.xlu0 %865, %v852
    %v867 = vpop.permute.xlu0 %866
    %870 = vset.pattern.permute.xlu0 0
    %871 = vperm.xlu0 %870, %v853
    %v872 = vpop.permute.xlu0 %871
    %v875 = vsel %vm248, %v846, 0
    %v878 = vsel %vm248, %v847, 0
    %v881 = vsel %vm248, %v848, 0
    %v884 = vsel %vm248, %v849, 0
    %886 = vmatprep.subr.mxu0 0.0
    %887 = vmatpush1.msra.mxu0 %v841
    %888 = vmatprep.subr.mxu0 0.0
    %889 = vmatpush1.msra.mxu0 %v842
    %890 = vmatprep.subr.mxu0 0.0
    %891 = vmatpush1.msra.mxu0 %v843
    %892 = vmatprep.subr.mxu0 0.0
    %893 = vmatpush1.msra.mxu0 %v844
    %894 = vmatprep.subr.mxu0 0.0
    %895 = vmatpush1.msra.mxu0 %v845
    %896 = vmatprep.subr.mxu0 0.0
    %897 = vmatpush1.msra.mxu0 0.0
    %898 = vmatprep.subr.mxu0 0.0
    %899 = vmatpush1.msra.mxu0 0.0
    %900 = vmatprep.subr.mxu0 0.0
    %901 = vmatpush1.msra.mxu0 0.0
    %902 = vmatprep.subr.mxu0 0.0
    %903 = vmatpush1.msra.mxu0 0.0
    %904 = vmatprep.subr.mxu0 0.0
    %905 = vmatpush1.msra.mxu0 0.0
    %906 = vmatprep.subr.mxu0 0.0
    %907 = vmatpush1.msra.mxu0 0.0
    %908 = vmatprep.subr.mxu0 0.0
    %909 = vmatpush1.msra.mxu0 0.0
    %910 = vmatprep.subr.mxu0 0.0
    %911 = vmatpush1.msra.mxu0 0.0
    %912 = vmatprep.subr.mxu0 0.0
    %913 = vmatpush1.msra.mxu0 0.0
    %914 = vmatprep.subr.mxu0 0.0
    %915 = vmatpush1.msra.mxu0 0.0
    %916 = vmatprep.subr.mxu0 0.0
    %917 = vmatpush1.msra.mxu0 0.0
    %918 = vmatprep.subr.mxu0 0.0
    %919 = vmatpush1.msra.mxu0 0.0
    %920 = vmatprep.subr.mxu0 0.0
    %921 = vmatpush1.msra.mxu0 0.0
    %922 = vmatprep.subr.mxu0 0.0
    %923 = vmatpush1.msra.mxu0 0.0
    %924 = vmatprep.subr.mxu0 0.0
    %925 = vmatpush1.msra.mxu0 0.0
    %926 = vmatprep.subr.mxu0 0.0
    %927 = vmatpush1.msra.mxu0 0.0
    %928 = vmatprep.subr.mxu0 0.0
    %929 = vmatpush1.msra.mxu0 0.0
    %930 = vmatprep.subr.mxu0 0.0
    %931 = vmatpush1.msra.mxu0 0.0
    %932 = vmatprep.subr.mxu0 0.0
    %933 = vmatpush1.msra.mxu0 0.0
    %934 = vmatprep.subr.mxu0 0.0
    %935 = vmatpush1.msra.mxu0 0.0
    %936 = vmatprep.subr.mxu0 0.0
    %937 = vmatpush1.msra.mxu0 0.0
    %938 = vmatprep.subr.mxu0 0.0
    %939 = vmatpush1.msra.mxu0 0.0
    %940 = vmatprep.subr.mxu0 0.0
    %941 = vmatpush1.msra.mxu0 0.0
    %942 = vmatprep.subr.mxu0 0.0
    %943 = vmatpush1.msra.mxu0 0.0
    %944 = vmatprep.subr.mxu0 0.0
    %945 = vmatpush1.msra.mxu0 0.0
    %946 = vmatprep.subr.mxu0 0.0
    %947 = vmatpush1.msra.mxu0 0.0
    %948 = vmatprep.subr.mxu0 0.0
    %949 = vmatpush1.msra.mxu0 0.0
    %950 = vmatprep.mubr.f32.mxu0 0.0
    %951 = vmatmul.mubr.f32.gmra.mrb[0].mxu0 %v875
    %v952 = vpop.f32.mrb[0].mxu0
    %v953 = vadd.f32 %v857, %v952
    %v954 = vpop.f32.mrb[0].mxu0
    %955 = vmatprep.mubr.f32.mxu0 0.0
    %956 = vmatmul.mubr.f32.gmra.mrb[0].mxu0 %v878
    %v957 = vpop.f32.mrb[0].mxu0
    %v958 = vadd.f32 %v862, %v957
    %v959 = vpop.f32.mrb[0].mxu0
    %960 = vmatprep.mubr.f32.mxu0 0.0
    %961 = vmatmul.mubr.f32.gmra.mrb[0].mxu0 %v881
    %v962 = vpop.f32.mrb[0].mxu0
    %v963 = vadd.f32 %v867, %v962
    %v964 = vpop.f32.mrb[0].mxu0
    %965 = vmatprep.mubr.f32.mxu0 0.0
    %966 = vmatmul.mubr.f32.gmra.mrb[0].mxu0 %v884
    %v967 = vpop.f32.mrb[0].mxu0
    %v968 = vadd.f32 %v872, %v967
    %v969 = vpop.f32.mrb[0].mxu0
    %970 = vdwg.mxu0
    %971 = vst [vmem:[#allocation2] sm:$0xff] %v953
    %972 = vst [vmem:[#allocation2 + $0x8] sm:$0xff] %v958
    %973 = vst [vmem:[#allocation2 + $0x10] sm:$0xff] %v963
    %974 = vst [vmem:[#allocation2 + $0x18] sm:$0xff] %v968
    // Predicated region
    $region58: #{tpu_custom_call.1} parent=1 // pred_check
      _
    $region59: #{tpu_custom_call.1} parent=1 // pred_check_branch
      %976 = sbr.rel (0) target = $region61
    $region60: #{tpu_custom_call.1} parent=1 // pred_region
      %s978 = ssub.s32 512, 512
      %979 = vsyncadd [#allocation3], %s978
      %s980 = sshll.u32 [#allocation2], 4
      %s981 = int_to_ptr.vmem [resolvable:$true] %s980
      %986 = dma.vmem_to_hbm [thread:$0]  %s981, 512, %s14, [#allocation3], 128, 128, 8
    $region61: #{tpu_custom_call.1} parent=1 // pred_fallthru
      _
    // Predicated region
    $region62: #{tpu_custom_call.1} parent=1 // pred_check
      _
    $region63: #{tpu_custom_call.1} parent=1 // pred_check_branch
      %988 = sbr.rel (0) target = $region65
    $region64: #{tpu_custom_call.1} parent=1 // pred_region
      %989 = dma.done [#allocation3], 512
    $region65: #{tpu_custom_call.1} parent=1 // pred_fallthru
      _
    %990 = vsyncpa [#allocation3], 1

</llo_original>
